<compile_context>
chip_gen: v7x
topology: tpu7x:2x2x1
jax: 0.10.0
libtpu: 0.0.40
codegen_flags: <defaults>
</compile_context>

<pallas_src>
import functools

import jax
import jax.numpy as jnp
from jax.experimental import pallas as pl
from jax.experimental.pallas import tpu as pltpu


# ----------------------------------------------------------------------------
# Shared factored BCE reduction (runs on whole VMEM-resident slabs).
# ----------------------------------------------------------------------------
def _bce_loss_value(p, y_raw, total_n):
    # PyTorch BCELoss clamps each log term at -100.
    log_p = jnp.maximum(jnp.log(p), -100.0)
    log_1mp = jnp.maximum(jnp.log(1.0 - p), -100.0)

    # Three independent reductions -> no serial max->normalize->sum dependency.
    m = jnp.max(y_raw)
    s1 = jnp.sum(y_raw * (log_p - log_1mp))
    s2 = jnp.sum(log_1mp)

    # Guard preserved: a zero label skips normalization (scale = 1).
    scale = jnp.where(m < 1e-6, jnp.float32(1.0), 1.0 / m)
    return -(scale * s1 + s2) / jnp.float32(total_n)


def _fused_bce_kernel(x_ref, lbl_ref, loss_ref, *, total_n):
    # Single image, gridless: whole slabs are VMEM resident.
    p = x_ref[...]
    y_raw = lbl_ref[...].astype(jnp.float32)   # uint8 -> f32 in-kernel (4x less DMA)
    loss_ref[0] = _bce_loss_value(p, y_raw, total_n)


def _fused_bce_batched_kernel(x_ref, lbl_ref, loss_ref, *, total_n):
    # One image per grid step; per-image independent output block.
    p = x_ref[...]
    y_raw = lbl_ref[...].astype(jnp.float32)
    val = _bce_loss_value(p, y_raw, total_n)
    # Broadcast the scalar into the (1, 8, 128) output block -> one unmasked vst.
    loss_ref[...] = jnp.full(loss_ref.shape, val, dtype=jnp.float32)


# ----------------------------------------------------------------------------
# Layout helper: lane-dense slab with unpadded sublanes for uint8 + f32.
# ----------------------------------------------------------------------------
def _lane_dense_shape(n):
    """Pick (rows, lanes) with lanes % 128 == 0; prefer rows % 32 == 0 so the
    uint8 label tile (32-row sublane tile) needs no padding."""
    candidates = (1024, 512, 256, 128)
    for lanes in candidates:
        if n % lanes == 0 and (n // lanes) % 32 == 0:
            return (n // lanes, lanes)
    for lanes in candidates:
        if n % lanes == 0:
            return (n // lanes, lanes)
    return None


# ----------------------------------------------------------------------------
# Single-image wrapper: reproduces U2NetTarget.forward(x) given a synthetic
# grayscale label.  Gridless (per-call overhead dominates at 320x320).
# ----------------------------------------------------------------------------
def u2net_target_loss(x, raw_label):
    """x: (1, 1, H, W) predictions in (0, 1).  raw_label: (H, W) uint8 grayscale."""
    _, _, H, W = x.shape
    assert raw_label.shape == (H, W)
    n = H * W

    shape2d = _lane_dense_shape(n) or (H, W)

    x2d = x.reshape(shape2d).astype(jnp.float32)
    lbl2d = raw_label.reshape(shape2d)          # keep uint8 in HBM

    kernel = functools.partial(_fused_bce_kernel, total_n=n)

    loss = pl.pallas_call(
        kernel,
        out_shape=jax.ShapeDtypeStruct((1,), jnp.float32),
        in_specs=[
            pl.BlockSpec(memory_space=pltpu.MemorySpace.VMEM),  # prediction
            pl.BlockSpec(memory_space=pltpu.MemorySpace.VMEM),  # uint8 label
        ],
        out_specs=pl.BlockSpec(memory_space=pltpu.SMEM),        # scalar loss
        cost_estimate=pl.CostEstimate(
            flops=8 * n, transcendentals=2 * n, bytes_accessed=5 * n + 4
        ),
    )(x2d, lbl2d)

    return loss[0]


# ----------------------------------------------------------------------------
# Batched wrapper: many images, one pallas_call, batch grid axis "parallel"
# (uses both TensorCores on v7x).  Returns per-image losses, shape (B,).
# ----------------------------------------------------------------------------
def u2net_target_loss_batched(x, raw_labels):
    """x: (B, 1, H, W) predictions in (0, 1).  raw_labels: (B, H, W) uint8."""
    B, _, H, W = x.shape
    assert raw_labels.shape == (B, H, W)
    n = H * W

    rows, lanes = _lane_dense_shape(n) or (H, W)

    x3d = x.reshape(B, rows, lanes).astype(jnp.float32)
    lbl3d = raw_labels.reshape(B, rows, lanes)

    kernel = functools.partial(_fused_bce_batched_kernel, total_n=n)

    out = pl.pallas_call(
        kernel,
        out_shape=jax.ShapeDtypeStruct((B, 8, 128), jnp.float32),
        grid=(B,),
        in_specs=[
            pl.BlockSpec((1, rows, lanes), lambda b: (b, 0, 0)),
            pl.BlockSpec((1, rows, lanes), lambda b: (b, 0, 0)),
        ],
        out_specs=pl.BlockSpec((1, 8, 128), lambda b: (b, 0, 0)),
        compiler_params=pltpu.CompilerParams(
            dimension_semantics=("parallel",)
        ),
        cost_estimate=pl.CostEstimate(
            flops=8 * n * B,
            transcendentals=2 * n * B,
            bytes_accessed=(5 * n + 4 * 8 * 128) * B,
        ),
    )(x3d, lbl3d)

    return out[:, 0, 0]


# ----------------------------------------------------------------------------
# Pure-JAX reference (faithful to the PyTorch module's numerics).
# ----------------------------------------------------------------------------
def _reference_loss(x, raw_label):
    lbl = raw_label.astype(jnp.float32)
    mv = jnp.max(lbl)
    lbl = jnp.where(mv < 1e-6, lbl, lbl / mv)
    p = x.reshape(lbl.shape).astype(jnp.float32)
    log_p = jnp.maximum(jnp.log(p), -100.0)
    log_1mp = jnp.maximum(jnp.log(1.0 - p), -100.0)
    return jnp.mean(-(lbl * log_p + (1.0 - lbl) * log_1mp))


if __name__ == "__main__":
    H, W = 64, 128  # small stand-in for the 320x320 rescaled image
    B = 3

    key = jax.random.PRNGKey(0)
    kx, kl, kxb, klb = jax.random.split(key, 4)

    # Predictions must be in (0, 1) for BCELoss -> sigmoid squash.
    x = jax.nn.sigmoid(jax.random.normal(kx, (1, 1, H, W), dtype=jnp.float32))

    # TODO(synk): cv2.imread / cvtColor / RescaleT1(320) file pipeline replaced
    # by a deterministic synthetic uint8 grayscale image (values in [0, 255]).
    raw_label = jax.random.randint(kl, (H, W), 0, 256, dtype=jnp.int32).astype(
        jnp.uint8
    )

    # --- single-image (gridless) path -------------------------------------
    loss = jax.block_until_ready(u2net_target_loss(x, raw_label))
    ref = _reference_loss(x, raw_label)
    assert jnp.allclose(loss, ref, rtol=1e-5, atol=1e-5), (loss, ref)

    # --- batched (gridded, parallel batch axis) path ----------------------
    xb = jax.nn.sigmoid(jax.random.normal(kxb, (B, 1, H, W), dtype=jnp.float32))
    lblb = jax.random.randint(klb, (B, H, W), 0, 256, dtype=jnp.int32).astype(
        jnp.uint8
    )
    # Exercise the max < 1e-6 guard with an all-zero label.
    lblb = lblb.at[1].set(0)

    losses = jax.block_until_ready(u2net_target_loss_batched(xb, lblb))
    for b in range(B):
        ref_b = _reference_loss(xb[b], lblb[b])
        assert jnp.allclose(losses[b], ref_b, rtol=1e-5, atol=1e-5), (
            b, losses[b], ref_b,
        )

    print("KERNEL_OK")
</pallas_src>

<mosaic_0001>
module attributes {stable_mosaic.version = 11 : i64} {
  func.func @_fused_bce_kernel(%arg0: memref<32x256xf32, #tpu.memory_space<vmem>>, %arg1: memref<32x256xi8, #tpu.memory_space<vmem>>, %arg2: memref<1xf32, #tpu.memory_space<smem>>) attributes {dimension_semantics = [], scalar_prefetch = 0 : i64, scratch_operands = 0 : i64, tpu.core_type = #tpu.core_type<tc>} {
    %c0 = arith.constant 0 : index
    %c0_0 = arith.constant 0 : index
    %0 = vector.load %arg0[%c0, %c0_0] : memref<32x256xf32, #tpu.memory_space<vmem>>, vector<32x256xf32>
    %c0_1 = arith.constant 0 : index
    %c0_2 = arith.constant 0 : index
    %1 = vector.load %arg1[%c0_1, %c0_2] : memref<32x256xi8, #tpu.memory_space<vmem>>, vector<32x256xi8>
    %2 = arith.uitofp %1 : vector<32x256xi8> to vector<32x256xf32>
    %3 = math.log %0 : vector<32x256xf32>
    %cst = arith.constant -1.000000e+02 : f32
    %4 = vector.broadcast %cst : f32 to vector<32x256xf32>
    %5 = arith.maximumf %3, %4 : vector<32x256xf32>
    %cst_3 = arith.constant 1.000000e+00 : f32
    %6 = vector.broadcast %cst_3 : f32 to vector<32x256xf32>
    %7 = arith.subf %6, %0 : vector<32x256xf32>
    %8 = math.log %7 : vector<32x256xf32>
    %cst_4 = arith.constant -1.000000e+02 : f32
    %9 = vector.broadcast %cst_4 : f32 to vector<32x256xf32>
    %10 = arith.maximumf %8, %9 : vector<32x256xf32>
    %11 = vector.shape_cast %2 : vector<32x256xf32> to vector<1x32x256xf32>
    %cst_5 = arith.constant dense<0xFF800000> : vector<1xf32>
    %12 = vector.multi_reduction <maximumf>, %11, %cst_5 [1, 2] : vector<1x32x256xf32> to vector<1xf32>
    %13 = vector.shape_cast %12 : vector<1xf32> to vector<1x1x1xf32>
    %14 = vector.extract %13[0, 0, 0] : f32 from vector<1x1x1xf32>
    %15 = arith.subf %5, %10 : vector<32x256xf32>
    %16 = arith.mulf %2, %15 : vector<32x256xf32>
    %17 = vector.shape_cast %16 : vector<32x256xf32> to vector<1x32x256xf32>
    %cst_6 = arith.constant dense<0.000000e+00> : vector<1xf32>
    %18 = vector.multi_reduction <add>, %17, %cst_6 [1, 2] : vector<1x32x256xf32> to vector<1xf32>
    %19 = vector.shape_cast %18 : vector<1xf32> to vector<1x1x1xf32>
    %20 = vector.extract %19[0, 0, 0] : f32 from vector<1x1x1xf32>
    %21 = vector.shape_cast %10 : vector<32x256xf32> to vector<1x32x256xf32>
    %cst_7 = arith.constant dense<0.000000e+00> : vector<1xf32>
    %22 = vector.multi_reduction <add>, %21, %cst_7 [1, 2] : vector<1x32x256xf32> to vector<1xf32>
    %23 = vector.shape_cast %22 : vector<1xf32> to vector<1x1x1xf32>
    %24 = vector.extract %23[0, 0, 0] : f32 from vector<1x1x1xf32>
    %cst_8 = arith.constant 9.99999997E-7 : f32
    %25 = arith.cmpf olt, %14, %cst_8 : f32
    %cst_9 = arith.constant 1.000000e+00 : f32
    %26 = arith.divf %cst_9, %14 : f32
    %cst_10 = arith.constant 1.000000e+00 : f32
    %27 = arith.select %25, %cst_10, %26 : f32
    %28 = arith.mulf %27, %20 : f32
    %29 = arith.addf %28, %24 : f32
    %cst_11 = arith.constant 0.000000e+00 : f32
    %30 = arith.subf %cst_11, %29 : f32
    %cst_12 = arith.constant 8.192000e+03 : f32
    %31 = arith.divf %30, %cst_12 : f32
    %c0_13 = arith.constant 0 : index
    %32 = memref.load %arg2[%c0_13] : memref<1xf32, #tpu.memory_space<smem>>
    memref.store %31, %arg2[%c0_13] : memref<1xf32, #tpu.memory_space<smem>>
    return
  }
}

</mosaic_0001>

<llo_original>
// kernel: tpu_custom_call.1
$region0: #{tpu_custom_call.1}
  #allocation0 [shape = 'u32[]', space=smem, size = 0x4, offset = 0x4, fixed_abs, tag = 'smem constant byte address 0x4 - core index']
  #allocation1 [shape = 'u32[144,128]{1,0:T(1,128)}', space=vmem, size = 0x12000, scoped, tag = 'internal scratch']
  %s0 = inlined_call_operand.hbm [shape: f32[32,256], index: 0, kind: input, shape index: {}]
  %s1 = inlined_call_operand.hbm [shape: u8[32,256], index: 1, kind: input, shape index: {}]
  %s2 = inlined_call_operand.hbm [shape: f32[1], index: 2, kind: output, shape index: {}]
  %s3 = sld [smem:[#allocation0]]
  $region26: #{tpu_custom_call.1} parent=0
    _
  %s5 = ssub.s32 1, %s3
  %s6 = scalar_select 0, %s5, %s3
  $region1: #{tpu_custom_call.1} parent=0
    #allocation2 [shape = 'u8[32768]{0}', space=vmem, size = 0x8000, scoped, tag = 'input window, operand 0, single buffered']
    #allocation3 [shape = 's32[1]{0}', space=sflag, size = 0x4, scoped, tag = 'scoped memory for tpu_custom_call.1']
    #allocation4 [shape = 's32[1]{0}', space=sflag, size = 0x4, scoped, tag = 'scoped memory for tpu_custom_call.1']
    #allocation5 [shape = 'u8[8192]{0}', space=vmem, size = 0x2000, scoped, tag = 'input window, operand 1, single buffered']
    #allocation6 [shape = 's32[1]{0}', space=sflag, size = 0x4, scoped, tag = 'scoped memory for tpu_custom_call.1']
    #allocation7 [shape = 'u8[512]{0}', space=smem, size = 0x200, scoped, tag = 'output window, operand 0, single buffered']
    %7 = vsyncpa [#allocation3], 0
    %8 = vsyncpa [#allocation6], 0
    %9 = vsyncpa [#allocation4], 0
    // Predicated region
    $region2: #{tpu_custom_call.1} parent=1 // pred_check
      _
    $region3: #{tpu_custom_call.1} parent=1 // pred_check_branch
      %11 = sbr.rel (0) target = $region5
    $region4: #{tpu_custom_call.1} parent=1 // pred_region
      %s13 = ssub.s32 1024, 1024
      %14 = vsyncadd [#allocation3], %s13
      %s15 = sshll.u32 [#allocation2], 4
      %s16 = int_to_ptr.vmem [resolvable:$true] %s15
      %21 = dma.hbm_to_vmem [thread:$0]  %s0, 1024, %s16, [#allocation3], 256, 256, 16
    $region5: #{tpu_custom_call.1} parent=1 // pred_fallthru
      _
    // Predicated region
    $region6: #{tpu_custom_call.1} parent=1 // pred_check
      _
    $region7: #{tpu_custom_call.1} parent=1 // pred_check_branch
      %23 = sbr.rel (0) target = $region9
    $region8: #{tpu_custom_call.1} parent=1 // pred_region
      %s25 = ssub.s32 256, 256
      %26 = vsyncadd [#allocation6], %s25
      %s28 = sshll.u32 [#allocation5], 4
      %s29 = int_to_ptr.vmem [resolvable:$true] %s28
      %31 = dma.hbm_to_vmem [thread:$0]  %s1, 256, %s29, [#allocation6]
    $region9: #{tpu_custom_call.1} parent=1 // pred_fallthru
      _
    // Predicated region
    $region10: #{tpu_custom_call.1} parent=1 // pred_check
      _
    $region11: #{tpu_custom_call.1} parent=1 // pred_check_branch
      %33 = sbr.rel (0) target = $region13
    $region12: #{tpu_custom_call.1} parent=1 // pred_region
      %34 = dma.done [#allocation3], 1024
    $region13: #{tpu_custom_call.1} parent=1 // pred_fallthru
      _
    // Predicated region
    $region14: #{tpu_custom_call.1} parent=1 // pred_check
      _
    $region15: #{tpu_custom_call.1} parent=1 // pred_check_branch
      %36 = sbr.rel (0) target = $region17
    $region16: #{tpu_custom_call.1} parent=1 // pred_region
      %37 = dma.done [#allocation6], 256
    $region17: #{tpu_custom_call.1} parent=1 // pred_fallthru
      _
    %v38 = vld [vmem:[#allocation2] sm:$0xff]
    %v39 = vld [vmem:[#allocation2 + $0x8] sm:$0xff]
    %v40 = vld [vmem:[#allocation2 + $0x10] sm:$0xff]
    %v41 = vld [vmem:[#allocation2 + $0x18] sm:$0xff]
    %v42 = vld [vmem:[#allocation2 + $0x20] sm:$0xff]
    %v43 = vld [vmem:[#allocation2 + $0x28] sm:$0xff]
    %v44 = vld [vmem:[#allocation2 + $0x30] sm:$0xff]
    %v45 = vld [vmem:[#allocation2 + $0x38] sm:$0xff]
    %v46 = vld [vmem:[#allocation5] sm:$0xff]
    %v47 = vld [vmem:[#allocation5 + $0x8] sm:$0xff]
    %v48 = vunpack.c.0.s8 %v46
    %v49 = vunpack.c.0.s8 %v47
    %v50 = vunpack.c.1.s8 %v46
    %v51 = vunpack.c.1.s8 %v47
    %v52 = vunpack.c.2.s8 %v46
    %v53 = vunpack.c.2.s8 %v47
    %v54 = vunpack.c.3.s8 %v46
    %v55 = vunpack.c.3.s8 %v47
    %v56 = vand.u32 %v48, 255
    %v57 = vand.u32 %v49, 255
    %v58 = vand.u32 %v50, 255
    %v59 = vand.u32 %v51, 255
    %v60 = vand.u32 %v52, 255
    %v61 = vand.u32 %v53, 255
    %v62 = vand.u32 %v54, 255
    %v63 = vand.u32 %v55, 255
    %v64 = vcvt.s32.f32 %v56
    %v65 = vcvt.s32.f32 %v57
    %v66 = vcvt.s32.f32 %v58
    %v67 = vcvt.s32.f32 %v59
    %v68 = vcvt.s32.f32 %v60
    %v69 = vcvt.s32.f32 %v61
    %v70 = vcvt.s32.f32 %v62
    %v71 = vcvt.s32.f32 %v63
    %v72 = vlog2.pop %v38
    %v73 = vmul.f32 %v72, 0.6931472
    %v74 = vlog2.pop %v39
    %v75 = vmul.f32 %v74, 0.6931472
    %v76 = vlog2.pop %v40
    %v77 = vmul.f32 %v76, 0.6931472
    %v78 = vlog2.pop %v41
    %v79 = vmul.f32 %v78, 0.6931472
    %v80 = vlog2.pop %v42
    %v81 = vmul.f32 %v80, 0.6931472
    %v82 = vlog2.pop %v43
    %v83 = vmul.f32 %v82, 0.6931472
    %v84 = vlog2.pop %v44
    %v85 = vmul.f32 %v84, 0.6931472
    %v86 = vlog2.pop %v45
    %v87 = vmul.f32 %v86, 0.6931472
    %v88 = vmax.f32 %v73, -100.0
    %v89 = vmax.f32 %v75, -100.0
    %v90 = vmax.f32 %v77, -100.0
    %v91 = vmax.f32 %v79, -100.0
    %v92 = vmax.f32 %v81, -100.0
    %v93 = vmax.f32 %v83, -100.0
    %v94 = vmax.f32 %v85, -100.0
    %v95 = vmax.f32 %v87, -100.0
    %v96 = vsub.f32 1.0, %v38
    %v97 = vsub.f32 1.0, %v39
    %v98 = vsub.f32 1.0, %v40
    %v99 = vsub.f32 1.0, %v41
    %v100 = vsub.f32 1.0, %v42
    %v101 = vsub.f32 1.0, %v43
    %v102 = vsub.f32 1.0, %v44
    %v103 = vsub.f32 1.0, %v45
    %v104 = vlog2.pop %v96
    %v105 = vmul.f32 %v104, 0.6931472
    %v106 = vlog2.pop %v97
    %v107 = vmul.f32 %v106, 0.6931472
    %v108 = vlog2.pop %v98
    %v109 = vmul.f32 %v108, 0.6931472
    %v110 = vlog2.pop %v99
    %v111 = vmul.f32 %v110, 0.6931472
    %v112 = vlog2.pop %v100
    %v113 = vmul.f32 %v112, 0.6931472
    %v114 = vlog2.pop %v101
    %v115 = vmul.f32 %v114, 0.6931472
    %v116 = vlog2.pop %v102
    %v117 = vmul.f32 %v116, 0.6931472
    %v118 = vlog2.pop %v103
    %v119 = vmul.f32 %v118, 0.6931472
    %v120 = vmax.f32 %v105, -100.0
    %v121 = vmax.f32 %v107, -100.0
    %v122 = vmax.f32 %v109, -100.0
    %v123 = vmax.f32 %v111, -100.0
    %v124 = vmax.f32 %v113, -100.0
    %v125 = vmax.f32 %v115, -100.0
    %v126 = vmax.f32 %v117, -100.0
    %v127 = vmax.f32 %v119, -100.0
    %v128 = vmax.f32 %v64, %v68
    %v129 = vmax.f32 %v65, %v69
    %v130 = vmax.f32 %v66, %v70
    %v131 = vmax.f32 %v67, %v71
    %v132 = vmax.f32 %v128, %v129
    %v133 = vmax.f32 %v130, %v131
    %v134 = vmax.f32 %v132, %v133
    %135 = vmax.xlane.f32.xlu0 %v134
    %v136 = vpop.xlane.xlu0 %135
    %v137 = vrot.slane %v136, 4
    %v138 = vmax.f32 %v136, %v137
    %v139 = vrot.slane %v138, 2
    %v140 = vmax.f32 %v138, %v139
    %v141 = vrot.slane %v140, 1
    %v142 = vmax.f32 %v140, %v141
    %s143 = vtos %v142
    %v144 = vsub.f32 %v88, %v120
    %v145 = vsub.f32 %v89, %v121
    %v146 = vsub.f32 %v90, %v122
    %v147 = vsub.f32 %v91, %v123
    %v148 = vsub.f32 %v92, %v124
    %v149 = vsub.f32 %v93, %v125
    %v150 = vsub.f32 %v94, %v126
    %v151 = vsub.f32 %v95, %v127
    %v152 = vmul.f32 %v64, %v144
    %v153 = vmul.f32 %v65, %v145
    %v154 = vmul.f32 %v66, %v146
    %v155 = vmul.f32 %v67, %v147
    %v156 = vmul.f32 %v68, %v148
    %v157 = vmul.f32 %v69, %v149
    %v158 = vmul.f32 %v70, %v150
    %v159 = vmul.f32 %v71, %v151
    %v160 = vadd.f32 %v152, %v153
    %v161 = vadd.f32 %v160, %v154
    %v162 = vadd.f32 %v161, %v155
    %v163 = vadd.f32 %v162, %v156
    %v164 = vadd.f32 %v163, %v157
    %v165 = vadd.f32 %v164, %v158
    %v166 = vadd.f32 %v165, %v159
    %167 = vadd.xlane.f32.xlu0 %v166
    %v168 = vpop.xlane.xlu0 %167
    %v169 = vrot.slane %v168, 4
    %v170 = vadd.f32 %v168, %v169
    %v171 = vrot.slane %v170, 2
    %v172 = vadd.f32 %v170, %v171
    %v173 = vrot.slane %v172, 1
    %v174 = vadd.f32 %v172, %v173
    %s175 = vtos %v174
    %v176 = vadd.f32 %v120, %v121
    %v177 = vadd.f32 %v176, %v122
    %v178 = vadd.f32 %v177, %v123
    %v179 = vadd.f32 %v178, %v124
    %v180 = vadd.f32 %v179, %v125
    %v181 = vadd.f32 %v180, %v126
    %v182 = vadd.f32 %v181, %v127
    %183 = vadd.xlane.f32.xlu0 %v182
    %v184 = vpop.xlane.xlu0 %183
    %v185 = vrot.slane %v184, 4
    %v186 = vadd.f32 %v184, %v185
    %v187 = vrot.slane %v186, 2
    %v188 = vadd.f32 %v186, %v187
    %v189 = vrot.slane %v188, 1
    %v190 = vadd.f32 %v188, %v189
    %s191 = vtos %v190
    %p192 = scmp.lt.f32.partialorder %s143, 1e-06
    %v193 = vstv %s143
    %v194 = vrcp.pop %v193
    %s195 = vtos %v194
    %s196 = scalar_select %p192, 1.0, %s195
    %s197 = smul.f32 %s196, %s175
    %s198 = sadd.f32 %s197, %s191
    %s199 = ssub.f32 0.0, %s198
    %v200 = vrcp.pop 8192.0
    %s201 = vtos %v200
    %s202 = smul.f32 %s199, %s201
    %s203 = scalar_lea.smem [#allocation7], 0
    %204 = sst [smem:[%s203]] %s202
    // Predicated region
    $region18: #{tpu_custom_call.1} parent=1 // pred_check
      _
    $region19: #{tpu_custom_call.1} parent=1 // pred_check_branch
      %206 = sbr.rel (0) target = $region21
    $region20: #{tpu_custom_call.1} parent=1 // pred_region
      %s208 = ssub.s32 16, 16
      %209 = vsyncadd [#allocation4], %s208
      %212 = dma.smem_to_hbm [#allocation7], 16, %s2, [#allocation4]
    $region21: #{tpu_custom_call.1} parent=1 // pred_fallthru
      _
    // Predicated region
    $region22: #{tpu_custom_call.1} parent=1 // pred_check
      _
    $region23: #{tpu_custom_call.1} parent=1 // pred_check_branch
      %214 = sbr.rel (0) target = $region25
    $region24: #{tpu_custom_call.1} parent=1 // pred_region
      %215 = dma.done [#allocation4], 16
    $region25: #{tpu_custom_call.1} parent=1 // pred_fallthru
      _
    %216 = sfence
    %217 = vsyncpa [#allocation3], 1
    %218 = vsyncpa [#allocation6], 1
    %219 = vsyncpa [#allocation4], 1

</llo_original>
